<compile_context>
chip_gen: v6e
topology: v6e:2x2x1
jax: 0.10.0
libtpu: 0.0.40
codegen_flags: <defaults>
</compile_context>

<pallas_src>
import jax
import jax.numpy as jnp
from jax.experimental import pallas as pl
from jax.experimental.pallas import tpu as pltpu


KH = KW = 3
CIN = 3
COUT = 64
K = KH * KW * CIN          # 27 real taps
K_PAD = 32                 # sublane-aligned contraction depth: 27 taps + 1 bias col + 4 zeros
TILE_M_MAX = 8192          # HBM-bound kernel -> big row tiles amortize ~0.35 us/step
                           # overhead; ~5 MiB double-buffered at the max tile


def _round_up(x, mult):
    return ((x + mult - 1) // mult) * mult


def _choose_tile_m(m):
    # Big tiles for DMA efficiency, but keep >=4 grid steps so both v7x TensorCores
    # get >=2 steps each (dimension_semantics=("parallel",) shards the 1-D grid).
    t = min(TILE_M_MAX, _round_up(max(1, -(-m // 4)), 16))
    return max(t, 16)


def _conv_gemm_kernel(p_ref, w_ref, o_ref):
    # p_ref: (TILE_M, K_PAD)  bf16 im2col patches (+1.0 bias column), one row tile
    # w_ref: (K_PAD, COUT)    bf16 weight matrix (+bias row), resident across the grid
    # o_ref: (TILE_M, COUT)   f32 output tile (64-wide, contiguous HBM writeback)
    o_ref[...] = jnp.dot(p_ref[...], w_ref[...], preferred_element_type=jnp.float32)


def tudui_forward(x_nchw, weight, bias):
    """x_nchw: (N, 3, H, W) f32; weight: (64, 3, 3, 3) OIHW; bias: (64,).
    Returns (N, 64, H-2, W-2) f32 (valid 3x3 conv, stride 1), matching nn.Conv2d."""
    n, cin, h, w = x_nchw.shape
    assert cin == CIN
    oh, ow = h - (KH - 1), w - (KW - 1)
    m = n * oh * ow
    tile_m = _choose_tile_m(m)
    m_pad = _round_up(m, tile_m)

    # ---- im2col + layout glue in XLA (keeps the Pallas kernel one dense GEMM) ----
    x_nhwc = jnp.transpose(x_nchw, (0, 2, 3, 1)).astype(jnp.float32)    # (N, H, W, Cin)
    taps = [x_nhwc[:, kh:kh + oh, kw:kw + ow, :]
            for kh in range(KH) for kw in range(KW)]                     # 9 x (N, OH, OW, Cin)
    patches = jnp.stack(taps, axis=3).reshape(m, K)                      # (M, 27), order (kh, kw, cin)
    patches = jnp.concatenate(
        [patches, jnp.ones((m, 1), patches.dtype)], axis=1)              # bias column -> (M, 28)
    patches = jnp.pad(patches, ((0, m_pad - m), (0, K_PAD - (K + 1))))
    patches = patches.astype(jnp.bfloat16)                               # (m_pad, 32)

    # OIHW -> (kh, kw, cin, cout) -> (27, 64); append bias row; zero-pad to (32, 64).
    w_mat = jnp.transpose(weight, (2, 3, 1, 0)).reshape(K, COUT)
    w_mat = jnp.concatenate(
        [w_mat, bias.reshape(1, COUT),
         jnp.zeros((K_PAD - (K + 1), COUT), w_mat.dtype)], axis=0)
    w_mat = w_mat.astype(jnp.bfloat16)                                   # (32, 64)

    grid = (m_pad // tile_m,)
    cost = pl.CostEstimate(
        flops=2 * m_pad * K_PAD * COUT,
        transcendentals=0,
        bytes_accessed=patches.size * 2 + w_mat.size * 2 + m_pad * COUT * 4,
    )

    out_flat = pl.pallas_call(
        _conv_gemm_kernel,
        out_shape=jax.ShapeDtypeStruct((m_pad, COUT), jnp.float32),
        grid=grid,
        in_specs=[
            pl.BlockSpec((tile_m, K_PAD), lambda i: (i, 0)),   # pipelined patch row tile
            pl.BlockSpec((K_PAD, COUT), lambda i: (0, 0)),     # resident weights (+bias row)
        ],
        out_specs=pl.BlockSpec((tile_m, COUT), lambda i: (i, 0)),
        compiler_params=pltpu.CompilerParams(
            dimension_semantics=("parallel",),                 # megacore / 2-TC sharding
        ),
        cost_estimate=cost,
    )(patches, w_mat)

    # Drop M padding; slice + reshape + NHWC->NCHW transpose fuse into one XLA pass.
    out = out_flat[:m].reshape(n, oh, ow, COUT)
    return jnp.transpose(out, (0, 3, 1, 2))


if __name__ == "__main__":
    key = jax.random.PRNGKey(0)
    kx, kw_, kb = jax.random.split(key, 3)

    # Small shapes consistent with Conv2d(3, 64, kernel_size=3): N=2, C=3, H=W=16
    x = jax.random.normal(kx, (2, CIN, 16, 16), dtype=jnp.float32)
    weight = jax.random.normal(kw_, (COUT, CIN, KH, KW), dtype=jnp.float32) * 0.1
    bias = jax.random.normal(kb, (COUT,), dtype=jnp.float32) * 0.1

    out = jax.block_until_ready(tudui_forward(x, weight, bias))
    assert out.shape == (2, COUT, 14, 14), out.shape

    # Reference with matching numerics (bf16 inputs, f32 accumulation, f32 bias).
    ref = jax.lax.conv_general_dilated(
        x.astype(jnp.bfloat16), weight.astype(jnp.bfloat16),
        window_strides=(1, 1), padding="VALID",
        dimension_numbers=("NCHW", "OIHW", "NCHW"),
        preferred_element_type=jnp.float32,
    ) + bias.reshape(1, COUT, 1, 1)
    assert jnp.allclose(out, ref, atol=2e-2, rtol=2e-2), float(jnp.max(jnp.abs(out - ref)))

    print("KERNEL_OK")
</pallas_src>

<mosaic_0001>
module attributes {stable_mosaic.version = 11 : i64} {
  func.func @_conv_gemm_kernel(%arg0: i32, %arg1: memref<112x32xbf16, #tpu.memory_space<vmem>>, %arg2: memref<32x64xbf16, #tpu.memory_space<vmem>>, %arg3: memref<112x64xf32, #tpu.memory_space<vmem>>) attributes {dimension_semantics = [#tpu.dimension_semantics<parallel>], iteration_bounds = array<i64: 4>, scalar_prefetch = 0 : i64, scratch_operands = 0 : i64, tpu.core_type = #tpu.core_type<tc>, window_params = [{transform_indices = @transform_0, window_bounds = array<i64: 112, 32>}, {pipeline_mode = #tpu.pipeline_mode<synchronous>, transform_indices = @transform_1, window_bounds = array<i64: 32, 64>}, {transform_indices = @transform_2, window_bounds = array<i64: 112, 64>}]} {
    %c0 = arith.constant 0 : index
    %c0_0 = arith.constant 0 : index
    %0 = vector.load %arg1[%c0, %c0_0] : memref<112x32xbf16, #tpu.memory_space<vmem>>, vector<112x32xbf16>
    %c0_1 = arith.constant 0 : index
    %c0_2 = arith.constant 0 : index
    %1 = vector.load %arg2[%c0_1, %c0_2] : memref<32x64xbf16, #tpu.memory_space<vmem>>, vector<32x64xbf16>
    %cst = arith.constant dense<0.000000e+00> : vector<112x64xf32>
    %2 = tpu.matmul %0, %1, %cst {dimension_numbers = #tpu.dot_dimension_numbers<[1], [0], [0], [1], [0, 0, 1, 1], [], []>} : vector<112x32xbf16>, vector<32x64xbf16>, vector<112x64xf32> -> vector<112x64xf32>
    %c0_3 = arith.constant 0 : index
    %c0_4 = arith.constant 0 : index
    %3 = vector.load %arg3[%c0_3, %c0_4] : memref<112x64xf32, #tpu.memory_space<vmem>>, vector<112x64xf32>
    tpu.vector_store %arg3[%c0_3, %c0_4], %2 {strides = array<i32>} : memref<112x64xf32, #tpu.memory_space<vmem>>, vector<112x64xf32>,
    return
  }
  func.func @transform_0(%arg0: i32) -> (i32, i32) {
    %c0_i32 = arith.constant 0 : i32
    %c0_i32_0 = arith.constant 0 : i32
    return %arg0, %c0_i32 : i32, i32
  }
  func.func @transform_1(%arg0: i32) -> (i32, i32) {
    %c0_i32 = arith.constant 0 : i32
    %c0_i32_0 = arith.constant 0 : i32
    %c0_i32_1 = arith.constant 0 : i32
    return %c0_i32, %c0_i32_0 : i32, i32
  }
  func.func @transform_2(%arg0: i32) -> (i32, i32) {
    %c0_i32 = arith.constant 0 : i32
    %c0_i32_0 = arith.constant 0 : i32
    return %arg0, %c0_i32 : i32, i32
  }
}

</mosaic_0001>

<llo_original>
// kernel: tpu_custom_call.1
$region0: #{tpu_custom_call.1}
  #allocation0 [shape = 'u32[]', space=smem, size = 0x4, offset = 0x4, fixed_abs, tag = 'smem constant byte address 0x4 - core index']
  #allocation1 [shape = 'u32[144,128]{1,0:T(1,128)}', space=vmem, size = 0x12000, scoped, tag = 'internal scratch']
  %s0 = inlined_call_operand.vmem [shape: bf16[448,32], index: 0, kind: input, shape index: {}]
  %s1 = inlined_call_operand.vmem [shape: bf16[32,64], index: 1, kind: input, shape index: {}]
  %s2 = inlined_call_operand.vmem [shape: f32[448,64], index: 2, kind: output, shape index: {}]
  %s3 = sld [smem:[#allocation0]]
  $region41: #{tpu_custom_call.1} parent=0
    _
  %s5 = ssub.s32 1, %s3
  %s6 = scalar_select 0, %s5, %s3
  loop: start=0, step=1, limit=6
  $region2: #{tpu_custom_call.1} parent=0 // loop_pre_header
    _
  $region3: #{tpu_custom_call.1} parent=0 // loop_header
    %s8 = sphi 0, %s12
    %p9 = scmp.ge.s32.totalorder %s8, 6
    %s18 = sphi 0, %s20
    %s21 = sphi 0, %s18
    %s22 = sphi 0, %s21
    %s38 = sphi 0, %s22
    %s42 = sphi 0, %s42
    %s44 = sphi 0, %s42
    %s45 = sphi 0, %s44
    %s59 = sphi 0, %s45
    %s65 = sphi 0, %s67
    %s68 = sphi 0, %s65
    %s69 = sphi 0, %s68
    %s85 = sphi 0, %s69
  $region4: #{tpu_custom_call.1} parent=0 // loop_header_branch
    %11 = sbr.rel (%p9) target = $region8
  $region5: #{tpu_custom_call.1} parent=0 // loop_body
    %s13 = ssub.s32 %s8, 1
    %s14 = ssub.s32 %s8, 2
    %s15 = sadd.s32 %s8, 1
    %s16 = ssub.s32 %s8, %s15
    %p17 = scmp.eq.s32.totalorder %s16, 0
    %s19 = sadd.s32 %s18, 1
    %s20 = scalar_select %p17, %s18, %s19
    %p23 = pneg %p17
    %p24 = scmp.eq.s32.totalorder %s8, 3
    %p25 = por %p23, %p24
    %p26 = scmp.ne.s32.totalorder %s18, %s21
    %p27 = scmp.eq.s32.totalorder %s8, 0
    %p28 = por %p26, %p27
    %p29 = scmp.ne.s32.totalorder %s18, %s21
    %p30 = scmp.eq.s32.totalorder %s13, 3
    %p31 = por %p29, %p30
    %p32 = scmp.ne.s32.totalorder %s21, %s22
    %p33 = scmp.eq.s32.totalorder %s13, 0
    %p34 = por %p32, %p33
    %p35 = scmp.ne.s32.totalorder %s21, %s22
    %p36 = scmp.eq.s32.totalorder %s14, 3
    %p37 = por %p35, %p36
    %p39 = scmp.ne.s32.totalorder %s22, %s38
    %p40 = scmp.eq.s32.totalorder %s14, 0
    %p41 = por %p39, %p40
    %s43 = sadd.s32 %s42, 1
    %p46 = scmp.eq.s32.totalorder %s8, 3
    %p47 = scmp.ne.s32.totalorder %s42, %s44
    %p48 = scmp.eq.s32.totalorder %s8, 0
    %p49 = por %p47, %p48
    %p50 = scmp.ne.s32.totalorder %s42, %s44
    %p51 = scmp.eq.s32.totalorder %s13, 3
    %p52 = por %p50, %p51
    %p53 = scmp.ne.s32.totalorder %s44, %s45
    %p54 = scmp.eq.s32.totalorder %s13, 0
    %p55 = por %p53, %p54
    %p56 = scmp.ne.s32.totalorder %s44, %s45
    %p57 = scmp.eq.s32.totalorder %s14, 3
    %p58 = por %p56, %p57
    %p60 = scmp.ne.s32.totalorder %s45, %s59
    %p61 = scmp.eq.s32.totalorder %s14, 0
    %p62 = por %p60, %p61
    %s63 = ssub.s32 %s8, %s15
    %p64 = scmp.eq.s32.totalorder %s63, 0
    %s66 = sadd.s32 %s65, 1
    %s67 = scalar_select %p64, %s65, %s66
    %p70 = pneg %p64
    %p71 = scmp.eq.s32.totalorder %s8, 3
    %p72 = por %p70, %p71
    %p73 = scmp.ne.s32.totalorder %s65, %s68
    %p74 = scmp.eq.s32.totalorder %s8, 0
    %p75 = por %p73, %p74
    %p76 = scmp.ne.s32.totalorder %s65, %s68
    %p77 = scmp.eq.s32.totalorder %s13, 3
    %p78 = por %p76, %p77
    %p79 = scmp.ne.s32.totalorder %s68, %s69
    %p80 = scmp.eq.s32.totalorder %s13, 0
    %p81 = por %p79, %p80
    %p82 = scmp.ne.s32.totalorder %s68, %s69
    %p83 = scmp.eq.s32.totalorder %s14, 3
    %p84 = por %p82, %p83
    %p86 = scmp.ne.s32.totalorder %s69, %s85
    %p87 = scmp.eq.s32.totalorder %s14, 0
    %p88 = por %p86, %p87
    %p89 = scmp.le.s32.totalorder 1, %s8
    %p90 = scmp.lt.s32.totalorder %s8, 5
    %p91 = pnand %p89, %p90
    %p92 = pneg %p91
    // Predicated region
    $region9: #{tpu_custom_call.1} parent=5 // pred_check
      _
    $region10: #{tpu_custom_call.1} parent=5 // pred_check_branch
      %94 = sbr.rel (%p91) target = $region12
    $region11: #{tpu_custom_call.1} parent=5 // pred_region
      %s95 = ssub.s32 %s8, 1
      // Predicated region
      $region13: #{tpu_custom_call.1} parent=11 // pred_check
        %p96 = pneg %p55
      $region14: #{tpu_custom_call.1} parent=11 // pred_check_branch
        %98 = sbr.rel (%p96) target = $region16
      $region15: #{tpu_custom_call.1} parent=11 // pred_region
        _
      $region16: #{tpu_custom_call.1} parent=11 // pred_fallthru
        _
    $region12: #{tpu_custom_call.1} parent=5 // pred_fallthru
      _
    %p99 = scmp.lt.s32.totalorder %s8, 4
    // Predicated region
    $region17: #{tpu_custom_call.1} parent=5 // pred_check
      %p100 = pneg %p99
    $region18: #{tpu_custom_call.1} parent=5 // pred_check_branch
      %102 = sbr.rel (%p100) target = $region20
    $region19: #{tpu_custom_call.1} parent=5 // pred_region
      // Predicated region
      $region21: #{tpu_custom_call.1} parent=19 // pred_check
        %p103 = pneg %p28
      $region22: #{tpu_custom_call.1} parent=19 // pred_check_branch
        %105 = sbr.rel (%p103) target = $region24
      $region23: #{tpu_custom_call.1} parent=19 // pred_region
        %s106 = smul.u32 14, %s8
        %p107 = scmp.lt.s32.totalorder %s106, 55
        %s108 = scalar_select %p107, %s106, 55
        %s109 = smul.addr %s108, 4
        %s110 = scalar_lea.vmem %s0, %s109
        %s111 = smul.u32 14, %s8
      $region24: #{tpu_custom_call.1} parent=19 // pred_fallthru
        _
    $region20: #{tpu_custom_call.1} parent=5 // pred_fallthru
      _
    %p112 = scmp.le.s32.totalorder 1, %s8
    %p113 = scmp.lt.s32.totalorder %s8, 5
    %p114 = pnand %p112, %p113
    %p115 = pneg %p114
    // Predicated region
    $region25: #{tpu_custom_call.1} parent=5 // pred_check
      _
    $region26: #{tpu_custom_call.1} parent=5 // pred_check_branch
      %117 = sbr.rel (%p114) target = $region28
    $region27: #{tpu_custom_call.1} parent=5 // pred_region
      %s118 = ssub.s32 %s8, 1
      %s119 = smul.u32 14, %s13
      %p120 = scmp.lt.s32.totalorder %s119, 55
      %s121 = scalar_select %p120, %s119, 55
      %s122 = smul.addr %s121, 4
      %s123 = scalar_lea.vmem %s0, %s122
      %p124 = pneg %p34
      %p125 = pneg %p31
      %p126 = pneg %p55
      %p127 = pneg %p52
      %p128 = pneg %p81
      %p129 = pneg %p78
      %s130 = smul.u32 14, %s13
      %p131 = scmp.lt.s32.totalorder %s130, 55
      %s132 = scalar_select %p131, %s130, 55
      %s133 = smul.addr %s132, 8
      %s134 = scalar_lea.vmem %s2, %s133
      %s135 = smul.u32 14, %s13
      %p136 = scmp.lt.s32.totalorder %s135, 55
      %s137 = scalar_select %p136, %s135, 55
      %s138 = smul.addr %s137, 4
      %s139 = scalar_lea.vmem %s0, %s138
      %s140 = smul.u32 14, %s13
      %s141 = smul.u32 14, %s13
      %p142 = scmp.lt.s32.totalorder %s141, 55
      %s143 = scalar_select %p142, %s141, 55
      %s144 = smul.addr %s143, 8
      %s145 = scalar_lea.vmem %s2, %s144
      %s146 = smul.u32 14, %s13
      %v148 = vld [vmem:[%s139] sm:$0xf]
      %v149 = vld [vmem:[%s139 + $0x4] sm:$0xf]
      %v150 = vld [vmem:[%s139 + $0x8] sm:$0xf]
      %v151 = vld [vmem:[%s139 + $0xc] sm:$0xf]
      %v152 = vld [vmem:[%s139 + $0x10] sm:$0xf]
      %v153 = vld [vmem:[%s139 + $0x14] sm:$0xf]
      %v154 = vld [vmem:[%s139 + $0x18] sm:$0xf]
      %v155 = vld [vmem:[%s139 + $0x1c] sm:$0xf]
      %v156 = vld [vmem:[%s139 + $0x20] sm:$0xf]
      %v157 = vld [vmem:[%s139 + $0x24] sm:$0xf]
      %v158 = vld [vmem:[%s139 + $0x28] sm:$0xf]
      %v159 = vld [vmem:[%s139 + $0x2c] sm:$0xf]
      %v160 = vld [vmem:[%s139 + $0x30] sm:$0xf]
      %v161 = vld [vmem:[%s139 + $0x34] sm:$0xf]
      %v162 = vld [vmem:[%s1] sm:$0xf]
      %v163 = vld [vmem:[%s1 + $0x4] sm:$0xf]
      %v164 = vld [vmem:[%s1 + $0x8] sm:$0xf]
      %v165 = vld [vmem:[%s1 + $0xc] sm:$0xf]
      %v180 = vunpack.c.l.b16 %v148
      %v181 = vunpack.c.l.b16 %v149
      %v182 = vunpack.c.l.b16 %v150
      %v183 = vunpack.c.l.b16 %v151
      %v184 = vunpack.c.l.b16 %v152
      %v185 = vunpack.c.l.b16 %v153
      %v186 = vunpack.c.l.b16 %v154
      %v187 = vunpack.c.l.b16 %v155
      %v188 = vunpack.c.l.b16 %v156
      %v189 = vunpack.c.l.b16 %v157
      %v190 = vunpack.c.l.b16 %v158
      %v191 = vunpack.c.l.b16 %v159
      %v192 = vunpack.c.l.b16 %v160
      %v193 = vunpack.c.l.b16 %v161
      %v194 = vpack.c.b16 %v181, %v180
      %v195 = vpack.c.b16 %v183, %v182
      %v196 = vpack.c.b16 %v185, %v184
      %v197 = vpack.c.b16 %v187, %v186
      %v198 = vpack.c.b16 %v189, %v188
      %v199 = vpack.c.b16 %v191, %v190
      %v200 = vpack.c.b16 %v193, %v192
      %v205 = vunpack.c.l.b16 %v162
      %v206 = vunpack.c.l.b16 %v163
      %v207 = vunpack.c.l.b16 %v164
      %v208 = vunpack.c.l.b16 %v165
      %v209 = vpack.c.b16 %v206, %v205
      %v210 = vpack.c.b16 %v208, %v207
      %vm213 = vcmask 261120
      %v215 = vsel %vm213, %v194, 0
      %v218 = vsel %vm213, %v195, 0
      %v221 = vsel %vm213, %v196, 0
      %v224 = vsel %vm213, %v197, 0
      %v227 = vsel %vm213, %v198, 0
      %v230 = vsel %vm213, %v199, 0
      %v233 = vsel %vm213, %v200, 0
      %235 = vmatprep.subr.bf16.mxu0 0
      %236 = vmatpush1.bf16.msra.mxu0 0
      %237 = vmatprep.subr.bf16.mxu0 0
      %238 = vmatpush1.bf16.msra.mxu0 0
      %239 = vmatprep.subr.bf16.mxu0 0
      %240 = vmatpush1.bf16.msra.mxu0 0
      %241 = vmatprep.subr.bf16.mxu0 0
      %242 = vmatpush1.bf16.msra.mxu0 0
      %243 = vmatprep.subr.bf16.mxu0 0
      %244 = vmatpush1.bf16.msra.mxu0 0
      %245 = vmatprep.subr.bf16.mxu0 0
      %246 = vmatpush1.bf16.msra.mxu0 0
      %247 = vmatprep.subr.bf16.mxu0 0
      %248 = vmatpush1.bf16.msra.mxu0 %v210
      %249 = vmatprep.subr.bf16.mxu0 0
      %250 = vmatpush1.bf16.msra.mxu0 %v209
      %251 = vmatprep.subr.bf16.mxu0 0
      %252 = vmatpush2.bf16.msra.mxu0 0
      %253 = vmatprep.subr.bf16.mxu0 0
      %254 = vmatpush2.bf16.msra.mxu0 0
      %255 = vmatprep.subr.bf16.mxu0 0
      %256 = vmatpush2.bf16.msra.mxu0 0
      %257 = vmatprep.subr.bf16.mxu0 0
      %258 = vmatpush2.bf16.msra.mxu0 0
      %259 = vmatprep.subr.bf16.mxu0 0
      %260 = vmatpush2.bf16.msra.mxu0 0
      %261 = vmatprep.subr.bf16.mxu0 0
      %262 = vmatpush2.bf16.msra.mxu0 0
      %263 = vmatprep.subr.bf16.mxu0 0
      %264 = vmatpush2.bf16.msra.mxu0 0
      %265 = vmatprep.subr.bf16.mxu0 0
      %266 = vmatpush2.bf16.msra.mxu0 0
      %267 = vmatprep.mubr.bf16.mxu0 0
      %268 = vmatmul.mubr.bf16.gmra.mxu0 %v215
      %v269 = vpop.f32.mrf.mxu0
      %v270 = vadd.f32 0.0, %v269
      %v271 = vpop.f32.mrf.mxu0
      %v272 = vpop.f32.mrf.mxu0
      %v273 = vadd.f32 0.0, %v272
      %v274 = vpop.f32.mrf.mxu0
      %275 = vmatprep.mubr.bf16.mxu0 0
      %276 = vmatmul.mubr.bf16.gmra.mxu0 %v218
      %v277 = vpop.f32.mrf.mxu0
      %v278 = vadd.f32 0.0, %v277
      %v279 = vpop.f32.mrf.mxu0
      %v280 = vpop.f32.mrf.mxu0
      %v281 = vadd.f32 0.0, %v280
      %v282 = vpop.f32.mrf.mxu0
      %283 = vmatprep.mubr.bf16.mxu0 0
      %284 = vmatmul.mubr.bf16.gmra.mxu0 %v221
      %v285 = vpop.f32.mrf.mxu0
      %v286 = vadd.f32 0.0, %v285
      %v287 = vpop.f32.mrf.mxu0
      %v288 = vpop.f32.mrf.mxu0
      %v289 = vadd.f32 0.0, %v288
      %v290 = vpop.f32.mrf.mxu0
      %291 = vmatprep.mubr.bf16.mxu0 0
      %292 = vmatmul.mubr.bf16.gmra.mxu0 %v224
      %v293 = vpop.f32.mrf.mxu0
      %v294 = vadd.f32 0.0, %v293
      %v295 = vpop.f32.mrf.mxu0
      %v296 = vpop.f32.mrf.mxu0
      %v297 = vadd.f32 0.0, %v296
      %v298 = vpop.f32.mrf.mxu0
      %299 = vmatprep.mubr.bf16.mxu0 0
      %300 = vmatmul.mubr.bf16.gmra.mxu0 %v227
      %v301 = vpop.f32.mrf.mxu0
      %v302 = vadd.f32 0.0, %v301
      %v303 = vpop.f32.mrf.mxu0
      %v304 = vpop.f32.mrf.mxu0
      %v305 = vadd.f32 0.0, %v304
      %v306 = vpop.f32.mrf.mxu0
      %307 = vmatprep.mubr.bf16.mxu0 0
      %308 = vmatmul.mubr.bf16.gmra.mxu0 %v230
      %v309 = vpop.f32.mrf.mxu0
      %v310 = vadd.f32 0.0, %v309
      %v311 = vpop.f32.mrf.mxu0
      %v312 = vpop.f32.mrf.mxu0
      %v313 = vadd.f32 0.0, %v312
      %v314 = vpop.f32.mrf.mxu0
      %315 = vmatprep.mubr.bf16.mxu0 0
      %316 = vmatmul.mubr.bf16.gmra.mxu0 %v233
      %v317 = vpop.f32.mrf.mxu0
      %v318 = vadd.f32 0.0, %v317
      %v319 = vpop.f32.mrf.mxu0
      %v320 = vpop.f32.mrf.mxu0
      %v321 = vadd.f32 0.0, %v320
      %v322 = vpop.f32.mrf.mxu0
      %323 = vdwg.mxu0
      %vm324 = vcmask 523264
      %325 = vst.msk [vmem:[%s145] sm:$0xff] %vm324, %v270
      %326 = vst.msk [vmem:[%s145 + $0x8] sm:$0xff] %vm324, %v273
      %327 = vst.msk [vmem:[%s145 + $0x10] sm:$0xff] %vm324, %v278
      %328 = vst.msk [vmem:[%s145 + $0x18] sm:$0xff] %vm324, %v281
      %329 = vst.msk [vmem:[%s145 + $0x20] sm:$0xff] %vm324, %v286
      %330 = vst.msk [vmem:[%s145 + $0x28] sm:$0xff] %vm324, %v289
      %331 = vst.msk [vmem:[%s145 + $0x30] sm:$0xff] %vm324, %v294
      %332 = vst.msk [vmem:[%s145 + $0x38] sm:$0xff] %vm324, %v297
      %333 = vst.msk [vmem:[%s145 + $0x40] sm:$0xff] %vm324, %v302
      %334 = vst.msk [vmem:[%s145 + $0x48] sm:$0xff] %vm324, %v305
      %335 = vst.msk [vmem:[%s145 + $0x50] sm:$0xff] %vm324, %v310
      %336 = vst.msk [vmem:[%s145 + $0x58] sm:$0xff] %vm324, %v313
      %337 = vst.msk [vmem:[%s145 + $0x60] sm:$0xff] %vm324, %v318
      %338 = vst.msk [vmem:[%s145 + $0x68] sm:$0xff] %vm324, %v321
      %s339 = smul.u32 14, %s13
      %p340 = scmp.lt.s32.totalorder %s339, 55
      %s341 = scalar_select %p340, %s339, 55
      %s342 = smul.addr %s341, 8
      %s343 = scalar_lea.vmem %s2, %s342
      // Predicated region
      $region29: #{tpu_custom_call.1} parent=27 // pred_check
        %p344 = pneg %p78
      $region30: #{tpu_custom_call.1} parent=27 // pred_check_branch
        %346 = sbr.rel (%p344) target = $region32
      $region31: #{tpu_custom_call.1} parent=27 // pred_region
        %s347 = smul.u32 14, %s13
      $region32: #{tpu_custom_call.1} parent=27 // pred_fallthru
        _
    $region28: #{tpu_custom_call.1} parent=5 // pred_fallthru
      _
    %p348 = scmp.le.s32.totalorder 2, %s8
    // Predicated region
    $region33: #{tpu_custom_call.1} parent=5 // pred_check
      %p349 = pneg %p348
    $region34: #{tpu_custom_call.1} parent=5 // pred_check_branch
      %351 = sbr.rel (%p349) target = $region36
    $region35: #{tpu_custom_call.1} parent=5 // pred_region
      %s352 = ssub.s32 %s8, 2
      // Predicated region
      $region37: #{tpu_custom_call.1} parent=35 // pred_check
        %p353 = pneg %p84
      $region38: #{tpu_custom_call.1} parent=35 // pred_check_branch
        %355 = sbr.rel (%p353) target = $region40
      $region39: #{tpu_custom_call.1} parent=35 // pred_region
        %s356 = smul.u32 14, %s14
        %p357 = scmp.lt.s32.totalorder %s356, 55
        %s358 = scalar_select %p357, %s356, 55
        %s359 = smul.addr %s358, 8
        %s360 = scalar_lea.vmem %s2, %s359
      $region40: #{tpu_custom_call.1} parent=35 // pred_fallthru
        _
    $region36: #{tpu_custom_call.1} parent=5 // pred_fallthru
      _
  $region6: #{tpu_custom_call.1} parent=0 // loop_footer
    %s12 = sadd.s32 1, %s8
  $region7: #{tpu_custom_call.1} parent=0 // loop_footer_branch
    %7 = sbr.rel target = $region3
  $region8: #{tpu_custom_call.1} parent=0 // loop_exit
    _

</llo_original>
